<compile_context>
chip_gen: v5e
topology: v5e:2x2
jax: 0.10.0
libtpu: 0.0.40
codegen_flags: <defaults>
</compile_context>

<pallas_src>
import functools

import jax
import jax.numpy as jnp
from jax.experimental import pallas as pl
from jax.experimental.pallas import tpu as pltpu

_LANE = 128
_SUBLANE = 8
_TM_MAX = 1024  # max batch rows per grid step (sublane-aligned)


def _round_up(x, m):
    return ((x + m - 1) // m) * m


def _fused_mlp_kernel(*refs, n_layers: int, compute_dtype):
    """Full MLP on one VMEM-resident batch tile.

    refs = (x_ref, w0_ref, b0_ref, ..., w{L-1}_ref, b{L-1}_ref, o_ref)
    Sigmoid after every layer except the last (matches Net.forward).
    Weights are stored in `compute_dtype` (f32 or bf16); bias-add, sigmoid and
    the MXU accumulator stay in f32.
    """
    x_ref = refs[0]
    o_ref = refs[-1]
    param_refs = refs[1:-1]

    h = x_ref[...]
    for i in range(n_layers):
        w = param_refs[2 * i][...]
        b = param_refs[2 * i + 1][...]  # (1, N) f32, broadcasts over rows
        h = jnp.dot(h.astype(compute_dtype), w,
                    preferred_element_type=jnp.float32) + b
        if i < n_layers - 1:
            h = jax.nn.sigmoid(h)
    o_ref[...] = h.astype(o_ref.dtype)


def _pad_hidden_params(params, compute_dtype):
    """Zero-pad hidden widths to multiples of 128 (lane-dense intermediates).

    For layer i < last: pad W columns and bias to 128k.
    For layer i > 0:    pad W rows (its K dim) to the previous layer's padded
                        width with zeros, so padded sigmoid lanes (=0.5)
                        contribute exactly 0 to the next layer.
    The final layer keeps its true output width (narrow masked store is
    cheaper than an 8x-inflated lane-dense store + wrapper slice).
    """
    n = len(params)
    padded = []
    prev_out_pad = None
    for i, (w, b) in enumerate(params):
        kin, kout = w.shape
        kin_pad = prev_out_pad if prev_out_pad is not None else kin
        kout_pad = _round_up(kout, _LANE) if i < n - 1 else kout
        w_p = jnp.pad(w, ((0, kin_pad - kin), (0, kout_pad - kout)))
        b_p = jnp.pad(b, ((0, 0), (0, kout_pad - kout)))
        padded.append((w_p.astype(compute_dtype), b_p.astype(jnp.float32)))
        prev_out_pad = kout_pad
    return padded


def _choose_batch_tiling(M):
    """Pick (tm, m_pad): large sublane-aligned tiles, >=2 grid steps if M>8."""
    m8 = _round_up(M, _SUBLANE)
    grid = max(1, -(-m8 // _TM_MAX))          # ceil(m8 / TM_MAX)
    if grid == 1 and m8 > _SUBLANE:
        grid = 2                               # let v7x's two TCs both work
    tm = _round_up(-(-m8 // grid), _SUBLANE)   # ceil(m8/grid), sublane-aligned
    m_pad = tm * (-(-m8 // tm))
    return tm, m_pad


def net_forward(x, params, *, use_bf16=False):
    """x: (M, K) f32; params: list of (w (in,out) f32, b (1,out) f32).

    Returns (M, out_units) f32, matching the per-layer PyTorch reference.
    """
    M, K = x.shape
    n_layers = len(params)
    n_out = params[-1][0].shape[1]
    compute_dtype = jnp.bfloat16 if use_bf16 else jnp.float32

    padded_params = _pad_hidden_params(params, compute_dtype)

    tm, m_pad = _choose_batch_tiling(M)
    x_c = x.astype(compute_dtype)
    x_p = jnp.pad(x_c, ((0, m_pad - M), (0, 0))) if m_pad != M else x_c

    # Specs: x tiled over batch, all params whole-array VMEM-resident.
    flat_params = []
    in_specs = [pl.BlockSpec((tm, K), lambda i: (i, 0))]
    for w, b in padded_params:
        kin, kout = w.shape
        flat_params.append(w)
        flat_params.append(b)
        in_specs.append(pl.BlockSpec((kin, kout), lambda i: (0, 0)))
        in_specs.append(pl.BlockSpec((1, kout), lambda i: (0, 0)))
    out_spec = pl.BlockSpec((tm, n_out), lambda i: (i, 0))

    # Explicit scoped-VMEM budget: resident params + double-buffered x/out
    # tiles + headroom, kept well under v7x's 64 MiB physical VMEM.
    param_bytes = sum(int(a.size) * a.dtype.itemsize for a in flat_params)
    io_bytes = 2 * tm * (K * x_p.dtype.itemsize + n_out * 4)
    vmem_limit = int(min(56 << 20,
                         max(32 << 20, 2 * (param_bytes + io_bytes) + (4 << 20))))

    kernel = functools.partial(_fused_mlp_kernel, n_layers=n_layers,
                               compute_dtype=compute_dtype)
    y = pl.pallas_call(
        kernel,
        out_shape=jax.ShapeDtypeStruct((m_pad, n_out), jnp.float32),
        grid=(m_pad // tm,),
        in_specs=in_specs,
        out_specs=out_spec,
        compiler_params=pltpu.CompilerParams(
            dimension_semantics=("parallel",),
            vmem_limit_bytes=vmem_limit,
        ),
    )(x_p, *flat_params)

    return y[:M] if m_pad != M else y


def init_net_params(key, inp_shape, hidden_layers, out_units):
    """Deterministic synthetic params matching nn.Linear shapes.

    Torch nn.Linear(in, out) has weight (out, in), bias (out,).
    Weights are stored pre-transposed to (in, out) for the kernel.
    """
    dims = [inp_shape] + list(hidden_layers) + [out_units]
    params = []
    for i in range(len(dims) - 1):
        k_in, k_out = dims[i], dims[i + 1]
        key, wk, bk = jax.random.split(key, 3)
        bound = 1.0 / jnp.sqrt(k_in)
        w = jax.random.uniform(wk, (k_in, k_out), jnp.float32, -bound, bound)
        b = jax.random.uniform(bk, (1, k_out), jnp.float32, -bound, bound)
        params.append((w, b))
    return params


if __name__ == "__main__":
    # Small shapes consistent with the MLP: batch=8, inp=32, hidden=[64, 32], out=16
    batch = 8
    inp_shape = 32
    hidden_layers = [64, 32]
    out_units = 16

    key = jax.random.PRNGKey(0)
    key, xk = jax.random.split(key)
    x = jax.random.normal(xk, (batch, inp_shape), jnp.float32)

    params = init_net_params(key, inp_shape, hidden_layers, out_units)

    # f32 compute by default (use_bf16=True is available for v6e/v7x MXU,
    # but would need a looser tolerance than 1e-4).
    out = net_forward(x, params, use_bf16=False)
    jax.block_until_ready(out)

    # Plain-JAX reference of the same math (sigmoid on all but last layer).
    ref = x
    n = len(params)
    for i, (w, b) in enumerate(params):
        ref = jnp.dot(ref, w, preferred_element_type=jnp.float32) + b
        if i < n - 1:
            ref = jax.nn.sigmoid(ref)

    assert out.shape == (batch, out_units)
    assert jnp.allclose(out, ref, atol=1e-4, rtol=1e-4)

    print("KERNEL_OK")
</pallas_src>

<mosaic_0001>
module attributes {stable_mosaic.version = 11 : i64} {
  func.func @_fused_mlp_kernel(%arg0: i32, %arg1: memref<8x32xf32, #tpu.memory_space<vmem>>, %arg2: memref<32x128xf32, #tpu.memory_space<vmem>>, %arg3: memref<1x128xf32, #tpu.memory_space<vmem>>, %arg4: memref<128x128xf32, #tpu.memory_space<vmem>>, %arg5: memref<1x128xf32, #tpu.memory_space<vmem>>, %arg6: memref<128x16xf32, #tpu.memory_space<vmem>>, %arg7: memref<1x16xf32, #tpu.memory_space<vmem>>, %arg8: memref<8x16xf32, #tpu.memory_space<vmem>>) attributes {dimension_semantics = [#tpu.dimension_semantics<parallel>], iteration_bounds = array<i64: 1>, scalar_prefetch = 0 : i64, scratch_operands = 0 : i64, tpu.core_type = #tpu.core_type<tc>, window_params = [{transform_indices = @transform_0, window_bounds = array<i64: 8, 32>}, {pipeline_mode = #tpu.pipeline_mode<synchronous>, transform_indices = @transform_1, window_bounds = array<i64: 32, 128>}, {pipeline_mode = #tpu.pipeline_mode<synchronous>, transform_indices = @transform_2, window_bounds = array<i64: 1, 128>}, {pipeline_mode = #tpu.pipeline_mode<synchronous>, transform_indices = @transform_3, window_bounds = array<i64: 128, 128>}, {pipeline_mode = #tpu.pipeline_mode<synchronous>, transform_indices = @transform_4, window_bounds = array<i64: 1, 128>}, {pipeline_mode = #tpu.pipeline_mode<synchronous>, transform_indices = @transform_5, window_bounds = array<i64: 128, 16>}, {pipeline_mode = #tpu.pipeline_mode<synchronous>, transform_indices = @transform_6, window_bounds = array<i64: 1, 16>}, {transform_indices = @transform_7, window_bounds = array<i64: 8, 16>}]} {
    %c0 = arith.constant 0 : index
    %c0_0 = arith.constant 0 : index
    %0 = vector.load %arg1[%c0, %c0_0] : memref<8x32xf32, #tpu.memory_space<vmem>>, vector<8x32xf32>
    %c0_1 = arith.constant 0 : index
    %c0_2 = arith.constant 0 : index
    %1 = vector.load %arg2[%c0_1, %c0_2] : memref<32x128xf32, #tpu.memory_space<vmem>>, vector<32x128xf32>
    %c0_3 = arith.constant 0 : index
    %c0_4 = arith.constant 0 : index
    %2 = vector.load %arg3[%c0_3, %c0_4] : memref<1x128xf32, #tpu.memory_space<vmem>>, vector<1x128xf32>
    %cst = arith.constant dense<0.000000e+00> : vector<8x128xf32>
    %3 = tpu.matmul %0, %1, %cst {dimension_numbers = #tpu.dot_dimension_numbers<[1], [0], [0], [1], [0, 0, 1, 1], [], []>} : vector<8x32xf32>, vector<32x128xf32>, vector<8x128xf32> -> vector<8x128xf32>
    %4 = vector.broadcast %2 : vector<1x128xf32> to vector<8x128xf32>
    %5 = arith.addf %3, %4 : vector<8x128xf32>
    %6 = arith.negf %5 : vector<8x128xf32>
    %7 = math.exp %6 : vector<8x128xf32>
    %cst_5 = arith.constant 1.000000e+00 : f32
    %8 = vector.broadcast %cst_5 : f32 to vector<8x128xf32>
    %9 = arith.addf %8, %7 : vector<8x128xf32>
    %10 = arith.divf %8, %9 : vector<8x128xf32>
    %c0_6 = arith.constant 0 : index
    %c0_7 = arith.constant 0 : index
    %11 = vector.load %arg4[%c0_6, %c0_7] : memref<128x128xf32, #tpu.memory_space<vmem>>, vector<128x128xf32>
    %c0_8 = arith.constant 0 : index
    %c0_9 = arith.constant 0 : index
    %12 = vector.load %arg5[%c0_8, %c0_9] : memref<1x128xf32, #tpu.memory_space<vmem>>, vector<1x128xf32>
    %cst_10 = arith.constant dense<0.000000e+00> : vector<8x128xf32>
    %13 = tpu.matmul %10, %11, %cst_10 {dimension_numbers = #tpu.dot_dimension_numbers<[1], [0], [0], [1], [0, 0, 1, 1], [], []>} : vector<8x128xf32>, vector<128x128xf32>, vector<8x128xf32> -> vector<8x128xf32>
    %14 = vector.broadcast %12 : vector<1x128xf32> to vector<8x128xf32>
    %15 = arith.addf %13, %14 : vector<8x128xf32>
    %16 = arith.negf %15 : vector<8x128xf32>
    %17 = math.exp %16 : vector<8x128xf32>
    %cst_11 = arith.constant 1.000000e+00 : f32
    %18 = vector.broadcast %cst_11 : f32 to vector<8x128xf32>
    %19 = arith.addf %18, %17 : vector<8x128xf32>
    %20 = arith.divf %18, %19 : vector<8x128xf32>
    %c0_12 = arith.constant 0 : index
    %c0_13 = arith.constant 0 : index
    %21 = vector.load %arg6[%c0_12, %c0_13] : memref<128x16xf32, #tpu.memory_space<vmem>>, vector<128x16xf32>
    %c0_14 = arith.constant 0 : index
    %c0_15 = arith.constant 0 : index
    %22 = vector.load %arg7[%c0_14, %c0_15] : memref<1x16xf32, #tpu.memory_space<vmem>>, vector<1x16xf32>
    %cst_16 = arith.constant dense<0.000000e+00> : vector<8x16xf32>
    %23 = tpu.matmul %20, %21, %cst_16 {dimension_numbers = #tpu.dot_dimension_numbers<[1], [0], [0], [1], [0, 0, 1, 1], [], []>} : vector<8x128xf32>, vector<128x16xf32>, vector<8x16xf32> -> vector<8x16xf32>
    %24 = vector.broadcast %22 : vector<1x16xf32> to vector<8x16xf32>
    %25 = arith.addf %23, %24 : vector<8x16xf32>
    %c0_17 = arith.constant 0 : index
    %c0_18 = arith.constant 0 : index
    %26 = vector.load %arg8[%c0_17, %c0_18] : memref<8x16xf32, #tpu.memory_space<vmem>>, vector<8x16xf32>
    tpu.vector_store %arg8[%c0_17, %c0_18], %25 {strides = array<i32>} : memref<8x16xf32, #tpu.memory_space<vmem>>, vector<8x16xf32>,
    return
  }
  func.func @transform_0(%arg0: i32) -> (i32, i32) {
    %c0_i32 = arith.constant 0 : i32
    %c0_i32_0 = arith.constant 0 : i32
    return %arg0, %c0_i32 : i32, i32
  }
  func.func @transform_1(%arg0: i32) -> (i32, i32) {
    %c0_i32 = arith.constant 0 : i32
    %c0_i32_0 = arith.constant 0 : i32
    %c0_i32_1 = arith.constant 0 : i32
    return %c0_i32, %c0_i32_0 : i32, i32
  }
  func.func @transform_2(%arg0: i32) -> (i32, i32) {
    %c0_i32 = arith.constant 0 : i32
    %c0_i32_0 = arith.constant 0 : i32
    %c0_i32_1 = arith.constant 0 : i32
    return %c0_i32, %c0_i32_0 : i32, i32
  }
  func.func @transform_3(%arg0: i32) -> (i32, i32) {
    %c0_i32 = arith.constant 0 : i32
    %c0_i32_0 = arith.constant 0 : i32
    %c0_i32_1 = arith.constant 0 : i32
    return %c0_i32, %c0_i32_0 : i32, i32
  }
  func.func @transform_4(%arg0: i32) -> (i32, i32) {
    %c0_i32 = arith.constant 0 : i32
    %c0_i32_0 = arith.constant 0 : i32
    %c0_i32_1 = arith.constant 0 : i32
    return %c0_i32, %c0_i32_0 : i32, i32
  }
  func.func @transform_5(%arg0: i32) -> (i32, i32) {
    %c0_i32 = arith.constant 0 : i32
    %c0_i32_0 = arith.constant 0 : i32
    %c0_i32_1 = arith.constant 0 : i32
    return %c0_i32, %c0_i32_0 : i32, i32
  }
  func.func @transform_6(%arg0: i32) -> (i32, i32) {
    %c0_i32 = arith.constant 0 : i32
    %c0_i32_0 = arith.constant 0 : i32
    %c0_i32_1 = arith.constant 0 : i32
    return %c0_i32, %c0_i32_0 : i32, i32
  }
  func.func @transform_7(%arg0: i32) -> (i32, i32) {
    %c0_i32 = arith.constant 0 : i32
    %c0_i32_0 = arith.constant 0 : i32
    return %arg0, %c0_i32 : i32, i32
  }
}

</mosaic_0001>

<llo_original>
// kernel: tpu_custom_call.1
$region0: #{tpu_custom_call.1}
  #allocation0 [shape = 'u32[]', space=smem, size = 0x4, offset = 0x4, fixed_abs, tag = 'smem constant byte address 0x4 - core index']
  #allocation1 [shape = 'u32[72,128]{1,0:T(1,128)}', space=vmem, size = 0x9000, scoped, tag = 'internal scratch']
  %s0 = inlined_call_operand.vmem [shape: f32[8,32], index: 0, kind: input, shape index: {}]
  %s1 = inlined_call_operand.hbm [shape: f32[32,128], index: 1, kind: input, shape index: {}]
  %s2 = inlined_call_operand.vmem [shape: f32[1,128], index: 2, kind: input, shape index: {}]
  %s3 = inlined_call_operand.vmem [shape: f32[128,128], index: 3, kind: input, shape index: {}]
  %s4 = inlined_call_operand.vmem [shape: f32[1,128], index: 4, kind: input, shape index: {}]
  %s5 = inlined_call_operand.vmem [shape: f32[128,16], index: 5, kind: input, shape index: {}]
  %s6 = inlined_call_operand.vmem [shape: f32[1,16], index: 6, kind: input, shape index: {}]
  %s7 = inlined_call_operand.hbm [shape: f32[8,16], index: 7, kind: output, shape index: {}]
  %s8 = sld [smem:[#allocation0]]
  $region42: #{tpu_custom_call.1} parent=0
    _
  %s10 = ssub.s32 1, %s8
  %s11 = scalar_select 0, %s10, %s8
  $region1: #{tpu_custom_call.1} parent=0
    #allocation2 [shape = 'u8[16384]{0}', space=vmem, size = 0x4000, scoped, tag = 'input window, operand 1, single buffered']
    #allocation3 [shape = 's32[1]{0}', space=sflag, size = 0x4, scoped, tag = 'scoped memory for tpu_custom_call.1']
    #allocation4 [shape = 's32[1]{0}', space=sflag, size = 0x4, scoped, tag = 'scoped memory for tpu_custom_call.1']
    #allocation5 [shape = 'u8[4096]{0}', space=vmem, size = 0x1000, scoped, tag = 'output window, operand 0, single buffered']
    %12 = vsyncpa [#allocation3], 0
    %13 = vsyncpa [#allocation4], 0
    // Predicated region
    $region2: #{tpu_custom_call.1} parent=1 // pred_check
      _
    $region3: #{tpu_custom_call.1} parent=1 // pred_check_branch
      %15 = sbr.rel (0) target = $region5
    $region4: #{tpu_custom_call.1} parent=1 // pred_region
      _
    $region5: #{tpu_custom_call.1} parent=1 // pred_fallthru
      _
    // Predicated region
    $region6: #{tpu_custom_call.1} parent=1 // pred_check
      _
    $region7: #{tpu_custom_call.1} parent=1 // pred_check_branch
      %17 = sbr.rel (0) target = $region9
    $region8: #{tpu_custom_call.1} parent=1 // pred_region
      %19 = vsyncadd [#allocation3], 0
      %s20 = sshll.u32 %s1, 4
      %s21 = int_to_ptr.hbm [resolvable:$true] %s20
      %s22 = sshll.u32 [#allocation2], 4
      %s23 = int_to_ptr.vmem [resolvable:$true] %s22
      %28 = dma.hbm_to_vmem [thread:$0]  %s21, 512, %s23, [#allocation3], 128, 128, 8
    $region9: #{tpu_custom_call.1} parent=1 // pred_fallthru
      _
    // Predicated region
    $region10: #{tpu_custom_call.1} parent=1 // pred_check
      _
    $region11: #{tpu_custom_call.1} parent=1 // pred_check_branch
      %30 = sbr.rel (0) target = $region13
    $region12: #{tpu_custom_call.1} parent=1 // pred_region
      _
    $region13: #{tpu_custom_call.1} parent=1 // pred_fallthru
      _
    // Predicated region
    $region14: #{tpu_custom_call.1} parent=1 // pred_check
      _
    $region15: #{tpu_custom_call.1} parent=1 // pred_check_branch
      %32 = sbr.rel (0) target = $region17
    $region16: #{tpu_custom_call.1} parent=1 // pred_region
      _
    $region17: #{tpu_custom_call.1} parent=1 // pred_fallthru
      _
    // Predicated region
    $region18: #{tpu_custom_call.1} parent=1 // pred_check
      _
    $region19: #{tpu_custom_call.1} parent=1 // pred_check_branch
      %34 = sbr.rel (0) target = $region21
    $region20: #{tpu_custom_call.1} parent=1 // pred_region
      _
    $region21: #{tpu_custom_call.1} parent=1 // pred_fallthru
      _
    // Predicated region
    $region22: #{tpu_custom_call.1} parent=1 // pred_check
      _
    $region23: #{tpu_custom_call.1} parent=1 // pred_check_branch
      %36 = sbr.rel (0) target = $region25
    $region24: #{tpu_custom_call.1} parent=1 // pred_region
      _
    $region25: #{tpu_custom_call.1} parent=1 // pred_fallthru
      _
    // Predicated region
    $region26: #{tpu_custom_call.1} parent=1 // pred_check
      _
    $region27: #{tpu_custom_call.1} parent=1 // pred_check_branch
      %38 = sbr.rel (0) target = $region29
    $region28: #{tpu_custom_call.1} parent=1 // pred_region
      _
    $region29: #{tpu_custom_call.1} parent=1 // pred_fallthru
      _
    // Predicated region
    $region30: #{tpu_custom_call.1} parent=1 // pred_check
      _
    $region31: #{tpu_custom_call.1} parent=1 // pred_check_branch
      %40 = sbr.rel (0) target = $region33
    $region32: #{tpu_custom_call.1} parent=1 // pred_region
      %42 = dma.done [#allocation3], 512
    $region33: #{tpu_custom_call.1} parent=1 // pred_fallthru
      _
    %v43 = vld [vmem:[%s0] sm:$0xff]
    %v44 = vld [vmem:[#allocation2] sm:$0xff]
    %v45 = vld [vmem:[#allocation2 + $0x8] sm:$0xff]
    %v46 = vld [vmem:[#allocation2 + $0x10] sm:$0xff]
    %v47 = vld [vmem:[#allocation2 + $0x18] sm:$0xff]
    %v48 = vld [vmem:[%s2] sm:$0x1]
    %v50 = vperm.slane %v48, 0
    %vm52 = vcmask 261120
    %v54 = vsel %vm52, %v43, 0
    %56 = vmatpush.msra.mxu0 0.0
    %57 = vmatpush.msra.mxu0 0.0
    %58 = vmatpush.msra.mxu0 0.0
    %59 = vmatpush.msra.mxu0 0.0
    %60 = vmatpush.msra.mxu0 0.0
    %61 = vmatpush.msra.mxu0 0.0
    %62 = vmatpush.msra.mxu0 0.0
    %63 = vmatpush.msra.mxu0 0.0
    %64 = vmatpush.msra.mxu0 0.0
    %65 = vmatpush.msra.mxu0 0.0
    %66 = vmatpush.msra.mxu0 0.0
    %67 = vmatpush.msra.mxu0 0.0
    %68 = vmatpush.msra.mxu0 %v47
    %69 = vmatpush.msra.mxu0 %v46
    %70 = vmatpush.msra.mxu0 %v45
    %71 = vmatpush.msra.mxu0 %v44
    %72 = vmatmul.f32.gmra.mxu0 %v54
    %v73 = vpop.f32.mrf.mxu0
    %v74 = vadd.f32 %v50, %v73
    %75 = vdwg.mxu0
    %v76 = vxor.u32 %v74, 2147483648
    %v77 = vmul.f32 %v76, 1.442695
    %v78 = vpow.pop %v77
    %v79 = vadd.f32 %v78, 1.0
    %v80 = vrcp.pop %v79
    %v81 = vmul.f32 %v79, %v80
    %v82 = vsub.f32 1.0, %v81
    %v83 = vmul.f32 %v80, %v82
    %v84 = vadd.f32 %v80, %v83
    %vm85 = vweird.f32 %v79
    %vm86 = vweird.f32 %v80
    %vm87 = vmor %vm85, %vm86
    %v88 = vsel %vm87, %v80, %v84
    %v89 = vand.u32 2147483647, %v79
    %vm90 = vcmp.eq.f32.partialorder %v89, 8.507059e+37
    %v91 = vand.u32 %v79, 2147483648
    %v92 = vor.u32 1.1754944e-38, %v91
    %v93 = vsel %vm90, %v92, %v88
    %v94 = vmul.f32 1.0, %v93
    %v95 = vld [vmem:[%s3] sm:$0xff]
    %v96 = vld [vmem:[%s3 + $0x8] sm:$0xff]
    %v97 = vld [vmem:[%s3 + $0x10] sm:$0xff]
    %v98 = vld [vmem:[%s3 + $0x18] sm:$0xff]
    %v99 = vld [vmem:[%s3 + $0x20] sm:$0xff]
    %v100 = vld [vmem:[%s3 + $0x28] sm:$0xff]
    %v101 = vld [vmem:[%s3 + $0x30] sm:$0xff]
    %v102 = vld [vmem:[%s3 + $0x38] sm:$0xff]
    %v103 = vld [vmem:[%s3 + $0x40] sm:$0xff]
    %v104 = vld [vmem:[%s3 + $0x48] sm:$0xff]
    %v105 = vld [vmem:[%s3 + $0x50] sm:$0xff]
    %v106 = vld [vmem:[%s3 + $0x58] sm:$0xff]
    %v107 = vld [vmem:[%s3 + $0x60] sm:$0xff]
    %v108 = vld [vmem:[%s3 + $0x68] sm:$0xff]
    %v109 = vld [vmem:[%s3 + $0x70] sm:$0xff]
    %v110 = vld [vmem:[%s3 + $0x78] sm:$0xff]
    %v111 = vld [vmem:[%s4] sm:$0x1]
    %v113 = vperm.slane %v111, 0
    %115 = vmatpush.msra.mxu0 %v110
    %116 = vmatpush.msra.mxu0 %v109
    %117 = vmatpush.msra.mxu0 %v108
    %118 = vmatpush.msra.mxu0 %v107
    %119 = vmatpush.msra.mxu0 %v106
    %120 = vmatpush.msra.mxu0 %v105
    %121 = vmatpush.msra.mxu0 %v104
    %122 = vmatpush.msra.mxu0 %v103
    %123 = vmatpush.msra.mxu0 %v102
    %124 = vmatpush.msra.mxu0 %v101
    %125 = vmatpush.msra.mxu0 %v100
    %126 = vmatpush.msra.mxu0 %v99
    %127 = vmatpush.msra.mxu0 %v98
    %128 = vmatpush.msra.mxu0 %v97
    %129 = vmatpush.msra.mxu0 %v96
    %130 = vmatpush.msra.mxu0 %v95
    %131 = vmatmul.f32.gmra.mxu0 %v94
    %v132 = vpop.f32.mrf.mxu0
    %v133 = vadd.f32 %v113, %v132
    %134 = vdwg.mxu0
    %v135 = vxor.u32 %v133, 2147483648
    %v136 = vmul.f32 %v135, 1.442695
    %v137 = vpow.pop %v136
    %v138 = vadd.f32 %v137, 1.0
    %v139 = vrcp.pop %v138
    %v140 = vmul.f32 %v138, %v139
    %v141 = vsub.f32 1.0, %v140
    %v142 = vmul.f32 %v139, %v141
    %v143 = vadd.f32 %v139, %v142
    %vm144 = vweird.f32 %v138
    %vm145 = vweird.f32 %v139
    %vm146 = vmor %vm144, %vm145
    %v147 = vsel %vm146, %v139, %v143
    %v148 = vand.u32 2147483647, %v138
    %vm149 = vcmp.eq.f32.partialorder %v148, 8.507059e+37
    %v150 = vand.u32 %v138, 2147483648
    %v151 = vor.u32 1.1754944e-38, %v150
    %v152 = vsel %vm149, %v151, %v147
    %v153 = vmul.f32 1.0, %v152
    %v154 = vld [vmem:[%s5] sm:$0xff]
    %v155 = vld [vmem:[%s5 + $0x8] sm:$0xff]
    %v156 = vld [vmem:[%s5 + $0x10] sm:$0xff]
    %v157 = vld [vmem:[%s5 + $0x18] sm:$0xff]
    %v158 = vld [vmem:[%s5 + $0x20] sm:$0xff]
    %v159 = vld [vmem:[%s5 + $0x28] sm:$0xff]
    %v160 = vld [vmem:[%s5 + $0x30] sm:$0xff]
    %v161 = vld [vmem:[%s5 + $0x38] sm:$0xff]
    %v162 = vld [vmem:[%s5 + $0x40] sm:$0xff]
    %v163 = vld [vmem:[%s5 + $0x48] sm:$0xff]
    %v164 = vld [vmem:[%s5 + $0x50] sm:$0xff]
    %v165 = vld [vmem:[%s5 + $0x58] sm:$0xff]
    %v166 = vld [vmem:[%s5 + $0x60] sm:$0xff]
    %v167 = vld [vmem:[%s5 + $0x68] sm:$0xff]
    %v168 = vld [vmem:[%s5 + $0x70] sm:$0xff]
    %v169 = vld [vmem:[%s5 + $0x78] sm:$0xff]
    %v170 = vld [vmem:[%s6] sm:$0x1]
    %v172 = vperm.slane %v170, 0
    %174 = vmatpush.msra.mxu0 %v169
    %175 = vmatpush.msra.mxu0 %v168
    %176 = vmatpush.msra.mxu0 %v167
    %177 = vmatpush.msra.mxu0 %v166
    %178 = vmatpush.msra.mxu0 %v165
    %179 = vmatpush.msra.mxu0 %v164
    %180 = vmatpush.msra.mxu0 %v163
    %181 = vmatpush.msra.mxu0 %v162
    %182 = vmatpush.msra.mxu0 %v161
    %183 = vmatpush.msra.mxu0 %v160
    %184 = vmatpush.msra.mxu0 %v159
    %185 = vmatpush.msra.mxu0 %v158
    %186 = vmatpush.msra.mxu0 %v157
    %187 = vmatpush.msra.mxu0 %v156
    %188 = vmatpush.msra.mxu0 %v155
    %189 = vmatpush.msra.mxu0 %v154
    %190 = vmatmul.f32.gmra.mxu0 %v153
    %v191 = vpop.f32.mrf.mxu0
    %v192 = vadd.f32 %v172, %v191
    %193 = vdwg.mxu0
    %vm194 = vcmask 130048
    %195 = vst.msk [vmem:[#allocation5] sm:$0xff] %vm194, %v192
    // Predicated region
    $region34: #{tpu_custom_call.1} parent=1 // pred_check
      _
    $region35: #{tpu_custom_call.1} parent=1 // pred_check_branch
      %197 = sbr.rel (0) target = $region37
    $region36: #{tpu_custom_call.1} parent=1 // pred_region
      %199 = vsyncadd [#allocation4], 0
      %s201 = sshll.u32 [#allocation5], 4
      %s202 = int_to_ptr.vmem [resolvable:$true] %s201
      %s203 = sshll.u32 %s7, 4
      %s204 = int_to_ptr.hbm [resolvable:$true] %s203
      %206 = dma.vmem_to_hbm [thread:$0]  %s202, 128, %s204, [#allocation4]
    $region37: #{tpu_custom_call.1} parent=1 // pred_fallthru
      _
    // Predicated region
    $region38: #{tpu_custom_call.1} parent=1 // pred_check
      _
    $region39: #{tpu_custom_call.1} parent=1 // pred_check_branch
      %208 = sbr.rel (0) target = $region41
    $region40: #{tpu_custom_call.1} parent=1 // pred_region
      %210 = dma.done [#allocation4], 128
    $region41: #{tpu_custom_call.1} parent=1 // pred_fallthru
      _
    %211 = vsyncpa [#allocation3], 1
    %212 = vsyncpa [#allocation4], 1

</llo_original>
